<compile_context>
chip_gen: v6e
topology: v6e:2x2x1
jax: 0.10.0
libtpu: 0.0.40
codegen_flags: <defaults>
</compile_context>

<pallas_src>
import jax
import jax.numpy as jnp
from jax.experimental import pallas as pl
from jax.experimental.pallas import tpu as pltpu


def _deep_explanation_kernel(x_ref, xn_ref, wt_ref, wpt_ref, out_x_ref, pred_ref):
    """One batch tile of the DeepExplanation forward.

    x_ref, xn_ref : (TB, C, HW) input dtype (f32 / bf16), HW on the lane axis
    wt_ref        : (C, C)  f32   == W.weight.T        (nn.Linear, bias=False)
    wpt_ref       : (C, NC) f32   == pred_fc.weight.T  (nn.Linear, bias=False)
    out_x_ref     : (TB, C, HW)   gated feature map (input dtype)
    pred_ref      : (TB, NC) f32  deep-prediction logits
    """
    x = x_ref[...].astype(jnp.float32)               # (TB, C, HW)
    xn = xn_ref[...].astype(jnp.float32)             # (TB, C, HW)

    # adaptive_avg_pool2d(., 1).squeeze()  ==  mean over the flattened spatial axis
    x_sq = jnp.mean(x, axis=-1)                      # (TB, C)
    xn_sq = jnp.mean(xn, axis=-1)                    # (TB, C)
    s = jnp.maximum(x_sq + xn_sq, 0.0)               # relu(x_sq + xn_sq)

    # z = self.W(s)   (Linear, bias=False)
    z = jnp.dot(s, wt_ref[...], preferred_element_type=jnp.float32)   # (TB, C)

    # attention gate: exp goes to the EUP; exact divide only on a tiny (TB, C) tile
    gate = 1.0 / (1.0 + jnp.exp(-z))                 # (TB, C)

    out_x_ref[...] = (x * gate[:, :, None]).astype(out_x_ref.dtype)   # (TB, C, HW)

    # deep_pred = self.pred_fc(z)
    pred_ref[...] = jnp.dot(z, wpt_ref[...], preferred_element_type=jnp.float32)


def _pick_batch_tile(batch, channels, hw, itemsize, budget_bytes=2 << 20):
    """Largest divisor of `batch` whose (TB, C, HW) tile fits the per-tile
    budget, preferring >= 2 grid steps so the pipeline has work to overlap."""
    row_bytes = max(1, channels * hw * itemsize)
    divisors = [d for d in range(1, batch + 1) if batch % d == 0]
    fitting = [d for d in divisors if d * row_bytes <= budget_bytes] or [1]
    multi_step = [d for d in fitting if batch // d >= 2]
    return max(multi_step) if multi_step else max(fitting)


def deep_explanation_forward(x, x_next, w_weight, pred_weight):
    """x, x_next: (B, C, H, W). w_weight: (C, C). pred_weight: (NC, C).

    Returns (gated_x (B, C, H, W), deep_pred (B, NC)) — matches the PyTorch return.
    """
    B, C, H, W = x.shape
    HW = H * W
    NC = pred_weight.shape[0]

    # NCHW -> (B, C, H*W): layout-preserving reshape, no dtype copy in HBM.
    x_f = x.reshape(B, C, HW)
    xn_f = x_next.reshape(B, C, HW)
    wt = jnp.asarray(w_weight, jnp.float32).T        # (C, C)
    wpt = jnp.asarray(pred_weight, jnp.float32).T    # (C, NC)

    itemsize = jnp.dtype(x_f.dtype).itemsize
    tb = _pick_batch_tile(B, C, HW, itemsize)
    nb = B // tb

    cost = pl.CostEstimate(
        flops=3 * B * C * HW + 2 * B * C * C + 2 * B * C * NC,
        transcendentals=B * C,
        bytes_accessed=itemsize * 3 * B * C * HW + 4 * (C * C + C * NC + B * NC),
    )

    out_x, pred = pl.pallas_call(
        _deep_explanation_kernel,
        out_shape=(
            jax.ShapeDtypeStruct((B, C, HW), x_f.dtype),
            # (nb, tb, NC) so the last two block dims always equal full dims.
            jax.ShapeDtypeStruct((nb, tb, NC), jnp.float32),
        ),
        grid=(nb,),
        in_specs=[
            pl.BlockSpec((tb, C, HW), lambda i: (i, 0, 0)),
            pl.BlockSpec((tb, C, HW), lambda i: (i, 0, 0)),
            pl.BlockSpec((C, C), lambda i: (0, 0)),      # constant -> fetched once
            pl.BlockSpec((C, NC), lambda i: (0, 0)),
        ],
        out_specs=(
            pl.BlockSpec((tb, C, HW), lambda i: (i, 0, 0)),
            pl.BlockSpec((None, tb, NC), lambda i: (i, 0, 0)),  # leading dim squeezed
        ),
        compiler_params=pltpu.CompilerParams(
            dimension_semantics=("parallel",),
            vmem_limit_bytes=32 * 1024 * 1024,
        ),
        cost_estimate=cost,
    )(x_f, xn_f, wt, wpt)

    # TODO(synk): self.activation / self.activation_all attribute side-effects
    # (not part of the returned tuple) are not materialized here.
    return out_x.reshape(B, C, H, W), pred.reshape(B, NC)


def _reference(x, x_next, w_weight, pred_weight):
    """Plain-JAX reference mirroring the PyTorch forward."""
    x_sq = jnp.mean(x, axis=(2, 3))
    xn_sq = jnp.mean(x_next, axis=(2, 3))
    s = jax.nn.relu(x_sq + xn_sq)
    z = s @ w_weight.T
    gate = jax.nn.sigmoid(z)[:, :, None, None]
    return x * gate, z @ pred_weight.T


if __name__ == "__main__":
    B, C, H, W = 2, 4, 16, 16
    num_classes = 8

    key = jax.random.PRNGKey(0)
    k1, k2, k3, k4 = jax.random.split(key, 4)

    x = jax.random.normal(k1, (B, C, H, W), dtype=jnp.float32)
    x_next = jax.random.normal(k2, (B, C, H, W), dtype=jnp.float32)
    # deterministic synthetic parameters (nn.Linear weight shapes)
    w_weight = jax.random.normal(k3, (C, C), dtype=jnp.float32) * 0.1              # self.W
    pred_weight = jax.random.normal(k4, (num_classes, C), dtype=jnp.float32) * 0.1  # pred_fc

    out_x, deep_pred = deep_explanation_forward(x, x_next, w_weight, pred_weight)
    jax.block_until_ready((out_x, deep_pred))

    ref_x, ref_pred = _reference(x, x_next, w_weight, pred_weight)
    assert out_x.shape == (B, C, H, W) and deep_pred.shape == (B, num_classes)
    assert jnp.allclose(out_x, ref_x, atol=1e-5, rtol=1e-5)
    assert jnp.allclose(deep_pred, ref_pred, atol=1e-5, rtol=1e-5)

    print("KERNEL_OK")
</pallas_src>

<mosaic_0001>
module attributes {stable_mosaic.version = 11 : i64} {
  func.func @_deep_explanation_kernel(%arg0: i32, %arg1: memref<1x4x256xf32, #tpu.memory_space<vmem>>, %arg2: memref<1x4x256xf32, #tpu.memory_space<vmem>>, %arg3: memref<4x4xf32, #tpu.memory_space<vmem>>, %arg4: memref<4x8xf32, #tpu.memory_space<vmem>>, %arg5: memref<1x4x256xf32, #tpu.memory_space<vmem>>, %arg6: memref<1x1x8xf32, #tpu.memory_space<vmem>>) attributes {dimension_semantics = [#tpu.dimension_semantics<parallel>], iteration_bounds = array<i64: 2>, scalar_prefetch = 0 : i64, scratch_operands = 0 : i64, tpu.core_type = #tpu.core_type<tc>, window_params = [{transform_indices = @transform_0, window_bounds = array<i64: 1, 4, 256>}, {transform_indices = @transform_1, window_bounds = array<i64: 1, 4, 256>}, {pipeline_mode = #tpu.pipeline_mode<synchronous>, transform_indices = @transform_2, window_bounds = array<i64: 4, 4>}, {pipeline_mode = #tpu.pipeline_mode<synchronous>, transform_indices = @transform_3, window_bounds = array<i64: 4, 8>}, {transform_indices = @transform_4, window_bounds = array<i64: 1, 4, 256>}, {transform_indices = @transform_5, window_bounds = array<i64: 1, 1, 8>}]} {
    %c0 = arith.constant 0 : index
    %c0_0 = arith.constant 0 : index
    %c0_1 = arith.constant 0 : index
    %0 = vector.load %arg1[%c0, %c0_0, %c0_1] : memref<1x4x256xf32, #tpu.memory_space<vmem>>, vector<1x4x256xf32>
    %c0_2 = arith.constant 0 : index
    %c0_3 = arith.constant 0 : index
    %c0_4 = arith.constant 0 : index
    %1 = vector.load %arg2[%c0_2, %c0_3, %c0_4] : memref<1x4x256xf32, #tpu.memory_space<vmem>>, vector<1x4x256xf32>
    %cst = arith.constant dense<0.000000e+00> : vector<1x4xf32>
    %2 = vector.multi_reduction <add>, %0, %cst [2] : vector<1x4x256xf32> to vector<1x4xf32>
    %cst_5 = arith.constant 2.560000e+02 : f32
    %3 = vector.broadcast %cst_5 : f32 to vector<1x4xf32>
    %4 = arith.divf %2, %3 : vector<1x4xf32>
    %cst_6 = arith.constant dense<0.000000e+00> : vector<1x4xf32>
    %5 = vector.multi_reduction <add>, %1, %cst_6 [2] : vector<1x4x256xf32> to vector<1x4xf32>
    %cst_7 = arith.constant 2.560000e+02 : f32
    %6 = vector.broadcast %cst_7 : f32 to vector<1x4xf32>
    %7 = arith.divf %5, %6 : vector<1x4xf32>
    %8 = arith.addf %4, %7 : vector<1x4xf32>
    %cst_8 = arith.constant 0.000000e+00 : f32
    %9 = vector.broadcast %cst_8 : f32 to vector<1x4xf32>
    %10 = arith.maximumf %8, %9 : vector<1x4xf32>
    %c0_9 = arith.constant 0 : index
    %c0_10 = arith.constant 0 : index
    %11 = vector.load %arg3[%c0_9, %c0_10] : memref<4x4xf32, #tpu.memory_space<vmem>>, vector<4x4xf32>
    %cst_11 = arith.constant dense<0.000000e+00> : vector<1x4xf32>
    %12 = tpu.matmul %10, %11, %cst_11 {dimension_numbers = #tpu.dot_dimension_numbers<[1], [0], [0], [1], [0, 0, 1, 1], [], []>} : vector<1x4xf32>, vector<4x4xf32>, vector<1x4xf32> -> vector<1x4xf32>
    %cst_12 = arith.constant 0.000000e+00 : f32
    %13 = vector.broadcast %cst_12 : f32 to vector<1x4xf32>
    %14 = arith.subf %13, %12 : vector<1x4xf32>
    %15 = math.exp %14 : vector<1x4xf32>
    %cst_13 = arith.constant 1.000000e+00 : f32
    %16 = vector.broadcast %cst_13 : f32 to vector<1x4xf32>
    %17 = arith.addf %16, %15 : vector<1x4xf32>
    %cst_14 = arith.constant 1.000000e+00 : f32
    %18 = vector.broadcast %cst_14 : f32 to vector<1x4xf32>
    %19 = arith.divf %18, %17 : vector<1x4xf32>
    %20 = vector.shape_cast %19 : vector<1x4xf32> to vector<1x4x1xf32>
    %21 = vector.broadcast %20 : vector<1x4x1xf32> to vector<1x4x256xf32>
    %22 = arith.mulf %0, %21 : vector<1x4x256xf32>
    %c0_15 = arith.constant 0 : index
    %c0_16 = arith.constant 0 : index
    %c0_17 = arith.constant 0 : index
    %23 = vector.load %arg5[%c0_15, %c0_16, %c0_17] : memref<1x4x256xf32, #tpu.memory_space<vmem>>, vector<1x4x256xf32>
    tpu.vector_store %arg5[%c0_15, %c0_16, %c0_17], %22 {strides = array<i32>} : memref<1x4x256xf32, #tpu.memory_space<vmem>>, vector<1x4x256xf32>,
    %c0_18 = arith.constant 0 : index
    %c0_19 = arith.constant 0 : index
    %24 = vector.load %arg4[%c0_18, %c0_19] : memref<4x8xf32, #tpu.memory_space<vmem>>, vector<4x8xf32>
    %cst_20 = arith.constant dense<0.000000e+00> : vector<1x8xf32>
    %25 = tpu.matmul %12, %24, %cst_20 {dimension_numbers = #tpu.dot_dimension_numbers<[1], [0], [0], [1], [0, 0, 1, 1], [], []>} : vector<1x4xf32>, vector<4x8xf32>, vector<1x8xf32> -> vector<1x8xf32>
    %c0_21 = arith.constant 0 : index
    %c0_22 = arith.constant 0 : index
    %c0_23 = arith.constant 0 : index
    %26 = vector.load %arg6[%c0_21, %c0_22, %c0_23] : memref<1x1x8xf32, #tpu.memory_space<vmem>>, vector<1x1x8xf32>
    %27 = vector.shape_cast %26 : vector<1x1x8xf32> to vector<1x8xf32>
    %28 = vector.shape_cast %25 : vector<1x8xf32> to vector<1x1x8xf32>
    tpu.vector_store %arg6[%c0_21, %c0_22, %c0_23], %28 {strides = array<i32>} : memref<1x1x8xf32, #tpu.memory_space<vmem>>, vector<1x1x8xf32>,
    return
  }
  func.func @transform_0(%arg0: i32) -> (i32, i32, i32) {
    %c0_i32 = arith.constant 0 : i32
    %c0_i32_0 = arith.constant 0 : i32
    %c0_i32_1 = arith.constant 0 : i32
    return %arg0, %c0_i32, %c0_i32_0 : i32, i32, i32
  }
  func.func @transform_1(%arg0: i32) -> (i32, i32, i32) {
    %c0_i32 = arith.constant 0 : i32
    %c0_i32_0 = arith.constant 0 : i32
    %c0_i32_1 = arith.constant 0 : i32
    return %arg0, %c0_i32, %c0_i32_0 : i32, i32, i32
  }
  func.func @transform_2(%arg0: i32) -> (i32, i32) {
    %c0_i32 = arith.constant 0 : i32
    %c0_i32_0 = arith.constant 0 : i32
    %c0_i32_1 = arith.constant 0 : i32
    return %c0_i32, %c0_i32_0 : i32, i32
  }
  func.func @transform_3(%arg0: i32) -> (i32, i32) {
    %c0_i32 = arith.constant 0 : i32
    %c0_i32_0 = arith.constant 0 : i32
    %c0_i32_1 = arith.constant 0 : i32
    return %c0_i32, %c0_i32_0 : i32, i32
  }
  func.func @transform_4(%arg0: i32) -> (i32, i32, i32) {
    %c0_i32 = arith.constant 0 : i32
    %c0_i32_0 = arith.constant 0 : i32
    %c0_i32_1 = arith.constant 0 : i32
    return %arg0, %c0_i32, %c0_i32_0 : i32, i32, i32
  }
  func.func @transform_5(%arg0: i32) -> (i32, i32, i32) {
    %c0_i32 = arith.constant 0 : i32
    %c0_i32_0 = arith.constant 0 : i32
    %c0_i32_1 = arith.constant 0 : i32
    return %arg0, %c0_i32, %c0_i32_0 : i32, i32, i32
  }
}

</mosaic_0001>

<llo_original>
// kernel: tpu_custom_call.1
$region0: #{tpu_custom_call.1}
  #allocation0 [shape = 'u32[]', space=smem, size = 0x4, offset = 0x4, fixed_abs, tag = 'smem constant byte address 0x4 - core index']
  #allocation1 [shape = 'u32[144,128]{1,0:T(1,128)}', space=vmem, size = 0x12000, scoped, tag = 'internal scratch']
  %s0 = inlined_call_operand.hbm [shape: f32[2,4,256], index: 0, kind: input, shape index: {}]
  %s1 = inlined_call_operand.hbm [shape: f32[2,4,256], index: 1, kind: input, shape index: {}]
  %s2 = inlined_call_operand.hbm [shape: f32[4,4], index: 2, kind: input, shape index: {}]
  %s3 = inlined_call_operand.vmem [shape: f32[4,8], index: 3, kind: input, shape index: {}]
  %s4 = inlined_call_operand.hbm [shape: f32[2,4,256], index: 4, kind: output, shape index: {0}]
  %s5 = inlined_call_operand.hbm [shape: f32[2,1,8], index: 5, kind: output, shape index: {1}]
  %6 = xla_tuple %s4, %s5
  %s7 = sld [smem:[#allocation0]]
  $region69: #{tpu_custom_call.1} parent=0
    _
  %s9 = ssub.s32 1, %s7
  %s10 = scalar_select 0, %s9, %s7
  $region1: #{tpu_custom_call.1} parent=0
    #allocation2 [shape = 'u8[8192]{0}', space=vmem, size = 0x2000, scoped, tag = 'input window, operand 0']
    #allocation3 [shape = 's32[2]{0}', space=sflag, size = 0x8, scoped, tag = 'scoped memory for tpu_custom_call.1']
    #allocation4 [shape = 's32[2]{0}', space=sflag, size = 0x8, scoped, tag = 'scoped memory for tpu_custom_call.1']
    #allocation5 [shape = 'u8[8192]{0}', space=vmem, size = 0x2000, scoped, tag = 'input window, operand 1']
    #allocation6 [shape = 's32[2]{0}', space=sflag, size = 0x8, scoped, tag = 'scoped memory for tpu_custom_call.1']
    #allocation7 [shape = 'u8[2048]{0}', space=vmem, size = 0x800, scoped, tag = 'input window, operand 2, single buffered']
    #allocation8 [shape = 'u8[8192]{0}', space=vmem, size = 0x2000, scoped, tag = 'output window, operand 0']
    #allocation9 [shape = 'u8[1024]{0}', space=vmem, size = 0x400, scoped, tag = 'output window, operand 1']
    #allocation10 [shape = 's32[2]{0}', space=sflag, size = 0x8, scoped, tag = 'scoped memory for tpu_custom_call.1']
    %11 = vsyncpa [#allocation3], 0
    %s12 = scalar_lea.sflag [#allocation3], 1
    %13 = vsyncpa %s12, 0
    %14 = vsyncpa [#allocation6], 0
    %s15 = scalar_lea.sflag [#allocation6], 1
    %16 = vsyncpa %s15, 0
    %17 = vsyncpa [#allocation4], 0
    %s18 = scalar_lea.sflag [#allocation4], 1
    %19 = vsyncpa %s18, 0
    %20 = vsyncpa [#allocation10], 0
    %s21 = scalar_lea.sflag [#allocation10], 1
    %22 = vsyncpa %s21, 0
    loop: start=0, step=1, limit=4
    $region2: #{tpu_custom_call.1} parent=1 // loop_pre_header
      _
    $region3: #{tpu_custom_call.1} parent=1 // loop_header
      %s24 = sphi 0, %s28
      %p25 = scmp.ge.s32.totalorder %s24, 4
      %s34 = sphi 0, %s36
      %s37 = sphi 0, %s34
      %s38 = sphi 0, %s37
      %s54 = sphi 0, %s38
      %s60 = sphi 0, %s62
      %s63 = sphi 0, %s60
      %s64 = sphi 0, %s63
      %s80 = sphi 0, %s64
      %s84 = sphi 0, %s84
      %s86 = sphi 0, %s84
      %s87 = sphi 0, %s86
      %s101 = sphi 0, %s87
      %s105 = sphi 0, %s105
      %s107 = sphi 0, %s105
      %s108 = sphi 0, %s107
      %s122 = sphi 0, %s108
      %s128 = sphi 0, %s130
      %s131 = sphi 0, %s128
      %s132 = sphi 0, %s131
      %s148 = sphi 0, %s132
      %s154 = sphi 0, %s156
      %s157 = sphi 0, %s154
      %s158 = sphi 0, %s157
      %s174 = sphi 0, %s158
    $region4: #{tpu_custom_call.1} parent=1 // loop_header_branch
      %27 = sbr.rel (%p25) target = $region8
    $region5: #{tpu_custom_call.1} parent=1 // loop_body
      %s29 = ssub.s32 %s24, 1
      %s30 = ssub.s32 %s24, 2
      %s31 = sadd.s32 %s24, 1
      %s32 = ssub.s32 %s24, %s31
      %p33 = scmp.eq.s32.totalorder %s32, 0
      %s35 = sadd.s32 %s34, 1
      %s36 = scalar_select %p33, %s34, %s35
      %p39 = pneg %p33
      %p40 = scmp.eq.s32.totalorder %s24, 1
      %p41 = por %p39, %p40
      %p42 = scmp.ne.s32.totalorder %s34, %s37
      %p43 = scmp.eq.s32.totalorder %s24, 0
      %p44 = por %p42, %p43
      %p45 = scmp.ne.s32.totalorder %s34, %s37
      %p46 = scmp.eq.s32.totalorder %s29, 1
      %p47 = por %p45, %p46
      %p48 = scmp.ne.s32.totalorder %s37, %s38
      %p49 = scmp.eq.s32.totalorder %s29, 0
      %p50 = por %p48, %p49
      %p51 = scmp.ne.s32.totalorder %s37, %s38
      %p52 = scmp.eq.s32.totalorder %s30, 1
      %p53 = por %p51, %p52
      %p55 = scmp.ne.s32.totalorder %s38, %s54
      %p56 = scmp.eq.s32.totalorder %s30, 0
      %p57 = por %p55, %p56
      %s58 = ssub.s32 %s24, %s31
      %p59 = scmp.eq.s32.totalorder %s58, 0
      %s61 = sadd.s32 %s60, 1
      %s62 = scalar_select %p59, %s60, %s61
      %p65 = pneg %p59
      %p66 = scmp.eq.s32.totalorder %s24, 1
      %p67 = por %p65, %p66
      %p68 = scmp.ne.s32.totalorder %s60, %s63
      %p69 = scmp.eq.s32.totalorder %s24, 0
      %p70 = por %p68, %p69
      %p71 = scmp.ne.s32.totalorder %s60, %s63
      %p72 = scmp.eq.s32.totalorder %s29, 1
      %p73 = por %p71, %p72
      %p74 = scmp.ne.s32.totalorder %s63, %s64
      %p75 = scmp.eq.s32.totalorder %s29, 0
      %p76 = por %p74, %p75
      %p77 = scmp.ne.s32.totalorder %s63, %s64
      %p78 = scmp.eq.s32.totalorder %s30, 1
      %p79 = por %p77, %p78
      %p81 = scmp.ne.s32.totalorder %s64, %s80
      %p82 = scmp.eq.s32.totalorder %s30, 0
      %p83 = por %p81, %p82
      %s85 = sadd.s32 %s84, 1
      %p88 = scmp.eq.s32.totalorder %s24, 1
      %p89 = scmp.ne.s32.totalorder %s84, %s86
      %p90 = scmp.eq.s32.totalorder %s24, 0
      %p91 = por %p89, %p90
      %p92 = scmp.ne.s32.totalorder %s84, %s86
      %p93 = scmp.eq.s32.totalorder %s29, 1
      %p94 = por %p92, %p93
      %p95 = scmp.ne.s32.totalorder %s86, %s87
      %p96 = scmp.eq.s32.totalorder %s29, 0
      %p97 = por %p95, %p96
      %p98 = scmp.ne.s32.totalorder %s86, %s87
      %p99 = scmp.eq.s32.totalorder %s30, 1
      %p100 = por %p98, %p99
      %p102 = scmp.ne.s32.totalorder %s87, %s101
      %p103 = scmp.eq.s32.totalorder %s30, 0
      %p104 = por %p102, %p103
      %s106 = sadd.s32 %s105, 1
      %p109 = scmp.eq.s32.totalorder %s24, 1
      %p110 = scmp.ne.s32.totalorder %s105, %s107
      %p111 = scmp.eq.s32.totalorder %s24, 0
      %p112 = por %p110, %p111
      %p113 = scmp.ne.s32.totalorder %s105, %s107
      %p114 = scmp.eq.s32.totalorder %s29, 1
      %p115 = por %p113, %p114
      %p116 = scmp.ne.s32.totalorder %s107, %s108
      %p117 = scmp.eq.s32.totalorder %s29, 0
      %p118 = por %p116, %p117
      %p119 = scmp.ne.s32.totalorder %s107, %s108
      %p120 = scmp.eq.s32.totalorder %s30, 1
      %p121 = por %p119, %p120
      %p123 = scmp.ne.s32.totalorder %s108, %s122
      %p124 = scmp.eq.s32.totalorder %s30, 0
      %p125 = por %p123, %p124
      %s126 = ssub.s32 %s24, %s31
      %p127 = scmp.eq.s32.totalorder %s126, 0
      %s129 = sadd.s32 %s128, 1
      %s130 = scalar_select %p127, %s128, %s129
      %p133 = pneg %p127
      %p134 = scmp.eq.s32.totalorder %s24, 1
      %p135 = por %p133, %p134
      %p136 = scmp.ne.s32.totalorder %s128, %s131
      %p137 = scmp.eq.s32.totalorder %s24, 0
      %p138 = por %p136, %p137
      %p139 = scmp.ne.s32.totalorder %s128, %s131
      %p140 = scmp.eq.s32.totalorder %s29, 1
      %p141 = por %p139, %p140
      %p142 = scmp.ne.s32.totalorder %s131, %s132
      %p143 = scmp.eq.s32.totalorder %s29, 0
      %p144 = por %p142, %p143
      %p145 = scmp.ne.s32.totalorder %s131, %s132
      %p146 = scmp.eq.s32.totalorder %s30, 1
      %p147 = por %p145, %p146
      %p149 = scmp.ne.s32.totalorder %s132, %s148
      %p150 = scmp.eq.s32.totalorder %s30, 0
      %p151 = por %p149, %p150
      %s152 = ssub.s32 %s24, %s31
      %p153 = scmp.eq.s32.totalorder %s152, 0
      %s155 = sadd.s32 %s154, 1
      %s156 = scalar_select %p153, %s154, %s155
      %p159 = pneg %p153
      %p160 = scmp.eq.s32.totalorder %s24, 1
      %p161 = por %p159, %p160
      %p162 = scmp.ne.s32.totalorder %s154, %s157
      %p163 = scmp.eq.s32.totalorder %s24, 0
      %p164 = por %p162, %p163
      %p165 = scmp.ne.s32.totalorder %s154, %s157
      %p166 = scmp.eq.s32.totalorder %s29, 1
      %p167 = por %p165, %p166
      %p168 = scmp.ne.s32.totalorder %s157, %s158
      %p169 = scmp.eq.s32.totalorder %s29, 0
      %p170 = por %p168, %p169
      %p171 = scmp.ne.s32.totalorder %s157, %s158
      %p172 = scmp.eq.s32.totalorder %s30, 1
      %p173 = por %p171, %p172
      %p175 = scmp.ne.s32.totalorder %s158, %s174
      %p176 = scmp.eq.s32.totalorder %s30, 0
      %p177 = por %p175, %p176
      %p178 = scmp.le.s32.totalorder 1, %s24
      %p179 = scmp.lt.s32.totalorder %s24, 3
      %p180 = pnand %p178, %p179
      %p181 = pneg %p180
      // Predicated region
      $region9: #{tpu_custom_call.1} parent=5 // pred_check
        _
      $region10: #{tpu_custom_call.1} parent=5 // pred_check_branch
        %183 = sbr.rel (%p180) target = $region12
      $region11: #{tpu_custom_call.1} parent=5 // pred_region
        %s184 = ssub.s32 %s24, 1
        // Predicated region
        $region13: #{tpu_custom_call.1} parent=11 // pred_check
          %p185 = pneg %p97
        $region14: #{tpu_custom_call.1} parent=11 // pred_check_branch
          %187 = sbr.rel (%p185) target = $region16
        $region15: #{tpu_custom_call.1} parent=11 // pred_region
          %s189 = ssub.s32 64, 64
          %190 = vsyncadd [#allocation6], %s189
          %s192 = sshll.u32 [#allocation7], 4
          %s193 = int_to_ptr.vmem [resolvable:$true] %s192
          %195 = dma.hbm_to_vmem [thread:$0]  %s2, 64, %s193, [#allocation6]
        $region16: #{tpu_custom_call.1} parent=11 // pred_fallthru
          _
        // Predicated region
        $region17: #{tpu_custom_call.1} parent=11 // pred_check
          %p196 = pneg %p118
        $region18: #{tpu_custom_call.1} parent=11 // pred_check_branch
          %198 = sbr.rel (%p196) target = $region20
        $region19: #{tpu_custom_call.1} parent=11 // pred_region
          _
        $region20: #{tpu_custom_call.1} parent=11 // pred_fallthru
          _
      $region12: #{tpu_custom_call.1} parent=5 // pred_fallthru
        _
      %p199 = scmp.lt.s32.totalorder %s24, 2
      // Predicated region
      $region21: #{tpu_custom_call.1} parent=5 // pred_check
        %p200 = pneg %p199
      $region22: #{tpu_custom_call.1} parent=5 // pred_check_branch
        %202 = sbr.rel (%p200) target = $region24
      $region23: #{tpu_custom_call.1} parent=5 // pred_region
        // Predicated region
        $region25: #{tpu_custom_call.1} parent=23 // pred_check
          %p203 = pneg %p44
        $region26: #{tpu_custom_call.1} parent=23 // pred_check_branch
          %205 = sbr.rel (%p203) target = $region28
        $region27: #{tpu_custom_call.1} parent=23 // pred_region
          %s206 = sand.u32 %s34, 1
          %s207 = scalar_lea.sflag [#allocation3], %s206
          %s208 = sand.u32 %s34, 1
          %s209 = smul.addr %s208, 8
          %s210 = scalar_lea.vmem [#allocation2], %s209
          %s212 = ssub.s32 128, 128
          %213 = vsyncadd %s207, %s212
          %s214 = smul.addr %s24, 2
          %s215 = smul.addr %s214, 64
          %s216 = scalar_lea.hbm %s0, %s215
          %s218 = sshll.u32 %s210, 4
          %s219 = int_to_ptr.vmem [resolvable:$true] %s218
          %221 = dma.hbm_to_vmem [thread:$0]  %s216, 128, %s219, %s207
        $region28: #{tpu_custom_call.1} parent=23 // pred_fallthru
          _
        // Predicated region
        $region29: #{tpu_custom_call.1} parent=23 // pred_check
          %p222 = pneg %p70
        $region30: #{tpu_custom_call.1} parent=23 // pred_check_branch
          %224 = sbr.rel (%p222) target = $region32
        $region31: #{tpu_custom_call.1} parent=23 // pred_region
          %s225 = sand.u32 %s24, 1
          %s226 = scalar_lea.sflag [#allocation6], %s225
          %s227 = sand.u32 %s60, 1
          %s228 = smul.addr %s227, 8
          %s229 = scalar_lea.vmem [#allocation5], %s228
          %s231 = ssub.s32 128, 128
          %232 = vsyncadd %s226, %s231
          %s233 = smul.addr %s24, 2
          %s234 = smul.addr %s233, 64
          %s235 = scalar_lea.hbm %s1, %s234
          %s237 = sshll.u32 %s229, 4
          %s238 = int_to_ptr.vmem [resolvable:$true] %s237
          %240 = dma.hbm_to_vmem [thread:$0]  %s235, 128, %s238, %s226
        $region32: #{tpu_custom_call.1} parent=23 // pred_fallthru
          _
      $region24: #{tpu_custom_call.1} parent=5 // pred_fallthru
        _
      %p241 = scmp.le.s32.totalorder 1, %s24
      %p242 = scmp.lt.s32.totalorder %s24, 3
      %p243 = pnand %p241, %p242
      %p244 = pneg %p243
      // Predicated region
      $region33: #{tpu_custom_call.1} parent=5 // pred_check
        _
      $region34: #{tpu_custom_call.1} parent=5 // pred_check_branch
        %246 = sbr.rel (%p243) target = $region36
      $region35: #{tpu_custom_call.1} parent=5 // pred_region
        %s247 = ssub.s32 %s24, 1
        %s248 = sand.u32 %s37, 1
        %s249 = scalar_lea.sflag [#allocation3], %s248
        %s250 = sand.u32 %s37, 1
        %s251 = smul.addr %s250, 8
        %s252 = scalar_lea.vmem [#allocation2], %s251
        // Predicated region
        $region37: #{tpu_custom_call.1} parent=35 // pred_check
          %p253 = pneg %p50
        $region38: #{tpu_custom_call.1} parent=35 // pred_check_branch
          %255 = sbr.rel (%p253) target = $region40
        $region39: #{tpu_custom_call.1} parent=35 // pred_region
          %256 = dma.done %s249, 128
        $region40: #{tpu_custom_call.1} parent=35 // pred_fallthru
          _
        %s257 = sand.u32 %s29, 1
        %s258 = scalar_lea.sflag [#allocation6], %s257
        %s259 = sand.u32 %s63, 1
        %s260 = smul.addr %s259, 8
        %s261 = scalar_lea.vmem [#allocation5], %s260
        // Predicated region
        $region41: #{tpu_custom_call.1} parent=35 // pred_check
          %p262 = pneg %p76
        $region42: #{tpu_custom_call.1} parent=35 // pred_check_branch
          %264 = sbr.rel (%p262) target = $region44
        $region43: #{tpu_custom_call.1} parent=35 // pred_region
          %265 = dma.done %s258, 128
        $region44: #{tpu_custom_call.1} parent=35 // pred_fallthru
          _
        // Predicated region
        $region45: #{tpu_custom_call.1} parent=35 // pred_check
          %p266 = pneg %p97
        $region46: #{tpu_custom_call.1} parent=35 // pred_check_branch
          %268 = sbr.rel (%p266) target = $region48
        $region47: #{tpu_custom_call.1} parent=35 // pred_region
          %269 = dma.done [#allocation6], 64
        $region48: #{tpu_custom_call.1} parent=35 // pred_fallthru
          _
        %s270 = sand.u32 %s37, 1
        %s271 = scalar_lea.sflag [#allocation3], %s270
        %s272 = sand.u32 %s37, 1
        %s273 = smul.addr %s272, 8
        %s274 = scalar_lea.vmem [#allocation2], %s273
        %p275 = pneg %p50
        %p276 = pneg %p47
        %s277 = sand.u32 %s29, 1
        %s278 = scalar_lea.sflag [#allocation6], %s277
        %s279 = sand.u32 %s63, 1
        %s280 = smul.addr %s279, 8
        %s281 = scalar_lea.vmem [#allocation5], %s280
        %p282 = pneg %p76
        %p283 = pneg %p73
        %p284 = pneg %p97
        %p285 = pneg %p94
        %p286 = pneg %p118
        %p287 = pneg %p115
        %p288 = pneg %p144
        %p289 = pneg %p141
        %s290 = sand.u32 %s131, 1
        %s291 = scalar_lea.sflag [#allocation4], %s290
        %s292 = sand.u32 %s131, 1
        %s293 = smul.addr %s292, 8
        %s294 = scalar_lea.vmem [#allocation8], %s293
        %p295 = pneg %p170
        %p296 = pneg %p167
        %s297 = sand.u32 %s157, 1
        %s298 = scalar_lea.sflag [#allocation10], %s297
        %s299 = sand.u32 %s157, 1
        %s300 = scalar_lea.vmem [#allocation9], %s299
        %v301 = vld [vmem:[%s252] sm:$0xff]
        %v302 = vld [vmem:[%s261] sm:$0xff]
        %v304 = vcombine.high %v301, %v301
        %vm306 = vcmask 1043456
        %v307 = vsel %vm306, %v301, 0.0
        %v308 = vsel %vm306, %v304, 0.0
        %v309 = vadd.f32 %v307, %v308
        %310 = vadd.xlane.f32.xlu0 %v309
        %v311 = vpop.xlane.xlu0 %310
        %v312 = vrcp.pop 256.0
        %v313 = vmul.f32 %v311, %v312
        %v315 = vcombine.high %v302, %v302
        %v317 = vsel %vm306, %v302, 0.0
        %v318 = vsel %vm306, %v315, 0.0
        %v319 = vadd.f32 %v317, %v318
        %320 = vadd.xlane.f32.xlu0 %v319
        %v321 = vpop.xlane.xlu0 %320
        %v322 = vmul.f32 %v321, %v312
        %v323 = vadd.f32 %v313, %v322
        %v324 = vmax.f32 %v323, 0.0
        %v325 = vld [vmem:[#allocation7] sm:$0xf]
        %v327 = vlaneseq
        %v328 = vand.u32 %v327, 127
        %v329 = vlaneseq
        %v330 = vshrl.u32 %v329, 7
        %v331 = vsub.s32 %v328, %v330
        %v332 = vrot.slane %v324, %v331
        %vm333 = vcmask 31744
        %v334 = vsel %vm333, %v332, 0
        %v337 = vsel %vm306, %v325, 0
        %339 = vmatprep.subr.mxu0 0.0
        %340 = vmatpush1.msra.mxu0 0.0
        %341 = vmatprep.subr.mxu0 0.0
        %342 = vmatpush1.msra.mxu0 0.0
        %343 = vmatprep.subr.mxu0 0.0
        %344 = vmatpush1.msra.mxu0 0.0
        %345 = vmatprep.subr.mxu0 0.0
        %346 = vmatpush1.msra.mxu0 0.0
        %347 = vmatprep.subr.mxu0 0.0
        %348 = vmatpush1.msra.mxu0 0.0
        %349 = vmatprep.subr.mxu0 0.0
        %350 = vmatpush1.msra.mxu0 0.0
        %351 = vmatprep.subr.mxu0 0.0
        %352 = vmatpush1.msra.mxu0 0.0
        %353 = vmatprep.subr.mxu0 0.0
        %354 = vmatpush1.msra.mxu0 0.0
        %355 = vmatprep.subr.mxu0 0.0
        %356 = vmatpush1.msra.mxu0 0.0
        %357 = vmatprep.subr.mxu0 0.0
        %358 = vmatpush1.msra.mxu0 0.0
        %359 = vmatprep.subr.mxu0 0.0
        %360 = vmatpush1.msra.mxu0 0.0
        %361 = vmatprep.subr.mxu0 0.0
        %362 = vmatpush1.msra.mxu0 0.0
        %363 = vmatprep.subr.mxu0 0.0
        %364 = vmatpush1.msra.mxu0 0.0
        %365 = vmatprep.subr.mxu0 0.0
        %366 = vmatpush1.msra.mxu0 0.0
        %367 = vmatprep.subr.mxu0 0.0
        %368 = vmatpush1.msra.mxu0 0.0
        %369 = vmatprep.subr.mxu0 0.0
        %370 = vmatpush1.msra.mxu0 %v337
        %371 = vmatprep.subr.mxu0 0.0
        %372 = vmatpush2.msra.mxu0 0.0
        %373 = vmatprep.subr.mxu0 0.0
        %374 = vmatpush2.msra.mxu0 0.0
        %375 = vmatprep.subr.mxu0 0.0
        %376 = vmatpush2.msra.mxu0 0.0
        %377 = vmatprep.subr.mxu0 0.0
        %378 = vmatpush2.msra.mxu0 0.0
        %379 = vmatprep.subr.mxu0 0.0
        %380 = vmatpush2.msra.mxu0 0.0
        %381 = vmatprep.subr.mxu0 0.0
        %382 = vmatpush2.msra.mxu0 0.0
        %383 = vmatprep.subr.mxu0 0.0
        %384 = vmatpush2.msra.mxu0 0.0
        %385 = vmatprep.subr.mxu0 0.0
        %386 = vmatpush2.msra.mxu0 0.0
        %387 = vmatprep.subr.mxu0 0.0
        %388 = vmatpush2.msra.mxu0 0.0
        %389 = vmatprep.subr.mxu0 0.0
        %390 = vmatpush2.msra.mxu0 0.0
        %391 = vmatprep.subr.mxu0 0.0
        %392 = vmatpush2.msra.mxu0 0.0
        %393 = vmatprep.subr.mxu0 0.0
        %394 = vmatpush2.msra.mxu0 0.0
        %395 = vmatprep.subr.mxu0 0.0
        %396 = vmatpush2.msra.mxu0 0.0
        %397 = vmatprep.subr.mxu0 0.0
        %398 = vmatpush2.msra.mxu0 0.0
        %399 = vmatprep.subr.mxu0 0.0
        %400 = vmatpush2.msra.mxu0 0.0
        %401 = vmatprep.subr.mxu0 0.0
        %402 = vmatpush2.msra.mxu0 0.0
        %403 = vmatprep.mubr.f32.mxu0 0.0
        %404 = vmatmul.mubr.f32.gmra.mxu0 %v334
        %v405 = vpop.f32.mrf.mxu0
        %v406 = vadd.f32 0.0, %v405
        %v407 = vpop.f32.mrf.mxu0
        %408 = vdwg.mxu0
        %v409 = vsub.f32 0.0, %v406
        %v410 = vmul.f32 %v409, 1.442695
        %v411 = vpow.pop %v410
        %v412 = vadd.f32 %v411, 1.0
        %v413 = vrcp.pop %v412
        %v414 = vmul.f32 1.0, %v413
        %v415 = vlaneseq
        %v416 = vshrl.u32 %v415, 7
        %v417 = vsub.s32 0, %v416
        %v418 = vrot.slane %v414, %v417
        %420 = vbcast.lane.b32.xlu0 %v418, 256
        %v421 = vpop.permute.xlu0 %420
        %v424 = vunpack.c.l.s4 839922192
        %v425 = vunpack.c.0.s8 %v424
        %v426 = vlaneseq
        %v427 = vshrl.u32 %v426, 7
        %v428 = vsub.s32 %v425, %v427
        %v429 = vrot.slane %v421, %v428
        %v431 = vmul.f32 %v301, %v429
        %432 = vst [vmem:[%s294] sm:$0xff] %v431
        %v433 = vld [vmem:[%s3] sm:$0xf]
        %v435 = vsel %vm333, %v406, 0
        %v438 = vsel %vm306, %v433, 0
        %440 = vmatprep.subr.mxu0 0.0
        %441 = vmatpush1.msra.mxu0 0.0
        %442 = vmatprep.subr.mxu0 0.0
        %443 = vmatpush1.msra.mxu0 0.0
        %444 = vmatprep.subr.mxu0 0.0
        %445 = vmatpush1.msra.mxu0 0.0
        %446 = vmatprep.subr.mxu0 0.0
        %447 = vmatpush1.msra.mxu0 0.0
        %448 = vmatprep.subr.mxu0 0.0
        %449 = vmatpush1.msra.mxu0 0.0
        %450 = vmatprep.subr.mxu0 0.0
        %451 = vmatpush1.msra.mxu0 0.0
        %452 = vmatprep.subr.mxu0 0.0
        %453 = vmatpush1.msra.mxu0 0.0
        %454 = vmatprep.subr.mxu0 0.0
        %455 = vmatpush1.msra.mxu0 0.0
        %456 = vmatprep.subr.mxu0 0.0
        %457 = vmatpush1.msra.mxu0 0.0
        %458 = vmatprep.subr.mxu0 0.0
        %459 = vmatpush1.msra.mxu0 0.0
        %460 = vmatprep.subr.mxu0 0.0
        %461 = vmatpush1.msra.mxu0 0.0
        %462 = vmatprep.subr.mxu0 0.0
        %463 = vmatpush1.msra.mxu0 0.0
        %464 = vmatprep.subr.mxu0 0.0
        %465 = vmatpush1.msra.mxu0 0.0
        %466 = vmatprep.subr.mxu0 0.0
        %467 = vmatpush1.msra.mxu0 0.0
        %468 = vmatprep.subr.mxu0 0.0
        %469 = vmatpush1.msra.mxu0 0.0
        %470 = vmatprep.subr.mxu0 0.0
        %471 = vmatpush1.msra.mxu0 %v438
        %472 = vmatprep.subr.mxu0 0.0
        %473 = vmatpush2.msra.mxu0 0.0
        %474 = vmatprep.subr.mxu0 0.0
        %475 = vmatpush2.msra.mxu0 0.0
        %476 = vmatprep.subr.mxu0 0.0
        %477 = vmatpush2.msra.mxu0 0.0
        %478 = vmatprep.subr.mxu0 0.0
        %479 = vmatpush2.msra.mxu0 0.0
        %480 = vmatprep.subr.mxu0 0.0
        %481 = vmatpush2.msra.mxu0 0.0
        %482 = vmatprep.subr.mxu0 0.0
        %483 = vmatpush2.msra.mxu0 0.0
        %484 = vmatprep.subr.mxu0 0.0
        %485 = vmatpush2.msra.mxu0 0.0
        %486 = vmatprep.subr.mxu0 0.0
        %487 = vmatpush2.msra.mxu0 0.0
        %488 = vmatprep.subr.mxu0 0.0
        %489 = vmatpush2.msra.mxu0 0.0
        %490 = vmatprep.subr.mxu0 0.0
        %491 = vmatpush2.msra.mxu0 0.0
        %492 = vmatprep.subr.mxu0 0.0
        %493 = vmatpush2.msra.mxu0 0.0
        %494 = vmatprep.subr.mxu0 0.0
        %495 = vmatpush2.msra.mxu0 0.0
        %496 = vmatprep.subr.mxu0 0.0
        %497 = vmatpush2.msra.mxu0 0.0
        %498 = vmatprep.subr.mxu0 0.0
        %499 = vmatpush2.msra.mxu0 0.0
        %500 = vmatprep.subr.mxu0 0.0
        %501 = vmatpush2.msra.mxu0 0.0
        %502 = vmatprep.subr.mxu0 0.0
        %503 = vmatpush2.msra.mxu0 0.0
        %504 = vmatprep.mubr.f32.mxu0 0.0
        %505 = vmatmul.mubr.f32.gmra.mxu0 %v435
        %v506 = vpop.f32.mrf.mxu0
        %v507 = vadd.f32 0.0, %v506
        %v508 = vpop.f32.mrf.mxu0
        %509 = vdwg.mxu0
        %vm510 = vcmask 57344
        %511 = vst.msk [vmem:[%s300] sm:$0x1] %vm510, %v507
        %s512 = sand.u32 %s131, 1
        %s513 = scalar_lea.sflag [#allocation4], %s512
        %s514 = sand.u32 %s131, 1
        %s515 = smul.addr %s514, 8
        %s516 = scalar_lea.vmem [#allocation8], %s515
        %s517 = sand.u32 %s157, 1
        %s518 = scalar_lea.sflag [#allocation10], %s517
        %s519 = sand.u32 %s157, 1
        %s520 = scalar_lea.vmem [#allocation9], %s519
        // Predicated region
        $region49: #{tpu_custom_call.1} parent=35 // pred_check
          %p521 = pneg %p141
        $region50: #{tpu_custom_call.1} parent=35 // pred_check_branch
          %523 = sbr.rel (%p521) target = $region52
        $region51: #{tpu_custom_call.1} parent=35 // pred_region
          %s525 = ssub.s32 128, 128
          %526 = vsyncadd %s513, %s525
          %s527 = smul.addr %s29, 2
          %s528 = smul.addr %s527, 64
          %s529 = scalar_lea.hbm %s4, %s528
          %s531 = sshll.u32 %s516, 4
          %s532 = int_to_ptr.vmem [resolvable:$true] %s531
          %534 = dma.vmem_to_hbm [thread:$0]  %s532, 128, %s529, %s513
        $region52: #{tpu_custom_call.1} parent=35 // pred_fallthru
          _
        // Predicated region
        $region53: #{tpu_custom_call.1} parent=35 // pred_check
          %p535 = pneg %p167
        $region54: #{tpu_custom_call.1} parent=35 // pred_check_branch
          %537 = sbr.rel (%p535) target = $region56
        $region55: #{tpu_custom_call.1} parent=35 // pred_region
          %s539 = ssub.s32 16, 16
          %540 = vsyncadd %s518, %s539
          %s541 = smul.addr %s29, 16
          %s542 = scalar_lea.hbm %s5, %s541
          %s544 = sshll.u32 %s520, 4
          %s545 = int_to_ptr.vmem [resolvable:$true] %s544
          %547 = dma.vmem_to_hbm [thread:$0]  %s545, 16, %s542, %s518
        $region56: #{tpu_custom_call.1} parent=35 // pred_fallthru
          _
      $region36: #{tpu_custom_call.1} parent=5 // pred_fallthru
        _
      %p548 = scmp.le.s32.totalorder 2, %s24
      // Predicated region
      $region57: #{tpu_custom_call.1} parent=5 // pred_check
        %p549 = pneg %p548
      $region58: #{tpu_custom_call.1} parent=5 // pred_check_branch
        %551 = sbr.rel (%p549) target = $region60
      $region59: #{tpu_custom_call.1} parent=5 // pred_region
        %s552 = ssub.s32 %s24, 2
        // Predicated region
        $region61: #{tpu_custom_call.1} parent=59 // pred_check
          %p553 = pneg %p147
        $region62: #{tpu_custom_call.1} parent=59 // pred_check_branch
          %555 = sbr.rel (%p553) target = $region64
        $region63: #{tpu_custom_call.1} parent=59 // pred_region
          %s556 = sand.u32 %s132, 1
          %s557 = scalar_lea.sflag [#allocation4], %s556
          %s558 = sand.u32 %s132, 1
          %s559 = smul.addr %s558, 8
          %s560 = scalar_lea.vmem [#allocation8], %s559
          %561 = dma.done %s557, 128
        $region64: #{tpu_custom_call.1} parent=59 // pred_fallthru
          _
        // Predicated region
        $region65: #{tpu_custom_call.1} parent=59 // pred_check
          %p562 = pneg %p173
        $region66: #{tpu_custom_call.1} parent=59 // pred_check_branch
          %564 = sbr.rel (%p562) target = $region68
        $region67: #{tpu_custom_call.1} parent=59 // pred_region
          %s565 = sand.u32 %s158, 1
          %s566 = scalar_lea.sflag [#allocation10], %s565
          %s567 = sand.u32 %s158, 1
          %s568 = scalar_lea.vmem [#allocation9], %s567
          %569 = dma.done %s566, 16
        $region68: #{tpu_custom_call.1} parent=59 // pred_fallthru
          _
      $region60: #{tpu_custom_call.1} parent=5 // pred_fallthru
        _
    $region6: #{tpu_custom_call.1} parent=1 // loop_footer
      %s28 = sadd.s32 1, %s24
    $region7: #{tpu_custom_call.1} parent=1 // loop_footer_branch
      %23 = sbr.rel target = $region3
    $region8: #{tpu_custom_call.1} parent=1 // loop_exit
      _
    %570 = vsyncpa [#allocation3], 1
    %s571 = scalar_lea.sflag [#allocation3], 1
    %572 = vsyncpa %s571, 1
    %573 = vsyncpa [#allocation6], 1
    %s574 = scalar_lea.sflag [#allocation6], 1
    %575 = vsyncpa %s574, 1
    %576 = vsyncpa [#allocation4], 1
    %s577 = scalar_lea.sflag [#allocation4], 1
    %578 = vsyncpa %s577, 1
    %579 = vsyncpa [#allocation10], 1
    %s580 = scalar_lea.sflag [#allocation10], 1
    %581 = vsyncpa %s580, 1

</llo_original>
